<compile_context>
chip_gen: v5e
topology: v5e:2x2
jax: 0.10.0
libtpu: 0.0.40
codegen_flags: <defaults>
</compile_context>

<pallas_src>
import functools
import math

import jax
import jax.numpy as jnp
from jax.experimental import pallas as pl
from jax.experimental.pallas import tpu as pltpu


_MIN_GRID_STEPS = 4        # target >= min(N, 4) fused grid steps
_MAX_HW_TILE_LANES = 2048  # clamp for the two-pass streaming tile


def _vmem_budget_bytes():
    """Generation-aware VMEM block budget (~75% of physical capacity).

    v5e/v6e: 128 MiB physical -> ~96 MiB budget; v7x: 64 MiB -> ~48 MiB.
    The default scoped limit (16/32 MiB) is overridden per pallas_call via
    CompilerParams(vmem_limit_bytes=budget).
    """
    try:
        cap = int(pltpu.get_tpu_info().vmem_capacity_bytes)
    except Exception:
        cap = 64 * 1024 * 1024  # conservative fallback (v7x-sized physical)
    return (cap // 4) * 3


def _channel_conv_gate(s, w_ref, kernel_size, pad):
    """sigmoid(Conv1d_k(s)) along the last (channel) axis.  s: (B, C) f32."""
    C = s.shape[-1]
    s_pad = jnp.pad(s, ((0, 0), (pad, pad)))          # tiny (B, C+2*pad) array
    y = jnp.zeros_like(s)
    for j in range(kernel_size):                      # small static unroll
        y = y + w_ref[j] * s_pad[:, j:j + C]
    return jax.nn.sigmoid(y)


# ---------------------------------------------------------------------------
# Path A: fused single-pass kernel (pool + conv + sigmoid + rescale).
# ---------------------------------------------------------------------------
def _eca_fused_kernel(w_ref, x_ref, o_ref, *, kernel_size, pad):
    # w_ref : SMEM (k,) f32 conv weights, pre-scaled by 1/HW
    # x_ref : VMEM (TB, C, HW);  o_ref : VMEM (TB, C, HW)
    #
    # Pooling sum in f32 for accuracy, but do NOT keep a whole-tile f32 copy
    # alive across the gate computation (halves live VMEM for bf16 inputs).
    s = jnp.sum(x_ref[...].astype(jnp.float32), axis=-1)      # (TB, C)
    gate = _channel_conv_gate(s, w_ref, kernel_size, pad)     # (TB, C) f32
    # Native-dtype rescale: re-read x_ref (vld is cheap) and multiply in x's
    # dtype.  bf16 on v6e/v7x packs 2 elem/lane and skips up/down casts;
    # f32 inputs are numerically identical to the reference.
    o_ref[...] = x_ref[...] * gate.astype(o_ref.dtype)[:, :, None]


# ---------------------------------------------------------------------------
# Path B step 1: pooling + gate kernel (HW is the reduction axis).
# ---------------------------------------------------------------------------
def _eca_pool_gate_kernel(w_ref, x_ref, g_ref, *, kernel_size, pad,
                          hw_total, hw_tile):
    # w_ref : SMEM (k,) f32 conv weights, pre-scaled by 1/HW
    # x_ref : VMEM (1, C, hw_tile)
    # g_ref : VMEM (1, 1, C) f32  (accumulates the sum; finalized to the gate)
    h = pl.program_id(1)

    @pl.when(h == 0)
    def _():
        g_ref[...] = jnp.zeros_like(g_ref)

    x = x_ref[...].astype(jnp.float32)
    if hw_total % hw_tile != 0:
        # Mask the out-of-bounds tail of the last HW tile (stale VMEM data).
        pos = h * hw_tile + jax.lax.broadcasted_iota(jnp.int32, x.shape, 2)
        x = jnp.where(pos < hw_total, x, 0.0)
    g_ref[...] += jnp.sum(x, axis=-1)[:, None, :]      # (1, 1, C)

    @pl.when(h == pl.num_programs(1) - 1)
    def _():
        s = g_ref[...][:, 0, :]                        # (1, C)
        g_ref[...] = _channel_conv_gate(s, w_ref, kernel_size, pad)[:, None, :]


# ---------------------------------------------------------------------------
# Path B step 2: per-channel rescale (fully parallel 2-D grid).
# ---------------------------------------------------------------------------
def _eca_scale_kernel(g_ref, x_ref, o_ref):
    # g_ref : VMEM (1, C, 1) f32 ; x_ref / o_ref : VMEM (1, C, hw_tile)
    # NOTE: the ragged last HW tile is intentionally not masked here: Pallas
    # discards the out-of-bounds portion of the output block, and multiplying
    # the stale padding data it reads is harmless (never written back).
    o_ref[...] = x_ref[...] * g_ref[...].astype(x_ref.dtype)


# ---------------------------------------------------------------------------
# Wrapper
# ---------------------------------------------------------------------------
def _pick_tb(n, per_batch_bytes, budget):
    """Largest divisor of n fitting VMEM while keeping >= min(n,4) grid steps."""
    vmem_cap = max(1, budget // (4 * per_batch_bytes))     # double-buffered i/o
    steps_cap = max(1, n // min(n, _MIN_GRID_STEPS))       # pipeline + dual-TC
    max_tb = min(vmem_cap, steps_cap)
    tb = 1
    for d in range(1, n + 1):
        if n % d == 0 and d <= max_tb:
            tb = d
    return tb


def _pick_hw_tile(C, hw, itemsize, budget):
    max_lanes = budget // (4 * C * itemsize)
    tile = (min(max_lanes, _MAX_HW_TILE_LANES) // 128) * 128
    tile = max(128, tile)                              # multiple of 128
    return hw if hw <= tile else tile                  # full extent is legal


def eca_block(x, conv_w, *, force_two_pass=False, hw_tile=None, donate_x=False):
    """ECA forward.  x: (N, C, H, W); conv_w: (k,) Conv1d weight (no bias).

    donate_x=True aliases x's HBM buffer to the output (only for callers that
    never touch x again).
    """
    N, C, H, W = x.shape
    hw = H * W
    k = int(conv_w.shape[0])
    pad = (k - 1) // 2
    itemsize = jnp.dtype(x.dtype).itemsize

    budget = _vmem_budget_bytes()

    # Fold 1/HW into the (tiny) conv weights so the kernels reduce a raw sum.
    w_scaled = conv_w.astype(jnp.float32) / float(hw)

    x3 = x.reshape(N, C, hw)                           # free, contiguous reshape
    per_batch_bytes = C * hw * itemsize
    use_fused = (not force_two_pass) and (4 * per_batch_bytes <= budget)
    alias = {1: 0} if donate_x else {}

    if use_fused:
        tb = _pick_tb(N, per_batch_bytes, budget)
        out = pl.pallas_call(
            functools.partial(_eca_fused_kernel, kernel_size=k, pad=pad),
            out_shape=jax.ShapeDtypeStruct((N, C, hw), x.dtype),
            grid=(N // tb,),
            in_specs=[
                pl.BlockSpec(memory_space=pltpu.MemorySpace.SMEM),  # weights
                pl.BlockSpec((tb, C, hw), lambda n: (n, 0, 0)),     # x tile
            ],
            out_specs=pl.BlockSpec((tb, C, hw), lambda n: (n, 0, 0)),
            input_output_aliases=alias,
            compiler_params=pltpu.CompilerParams(
                dimension_semantics=("parallel",),
                vmem_limit_bytes=budget),
        )(w_scaled, x3)
        return out.reshape(N, C, H, W)

    # ------------------------- two-pass fallback ----------------------------
    if hw_tile is None:
        hw_tile = _pick_hw_tile(C, hw, itemsize, budget)
    n_hw = -(-hw // hw_tile)

    # Pass 1: pooled channel sums -> conv -> sigmoid gate, shape (N, 1, C).
    gate = pl.pallas_call(
        functools.partial(_eca_pool_gate_kernel, kernel_size=k, pad=pad,
                          hw_total=hw, hw_tile=hw_tile),
        out_shape=jax.ShapeDtypeStruct((N, 1, C), jnp.float32),
        grid=(N, n_hw),
        in_specs=[
            pl.BlockSpec(memory_space=pltpu.MemorySpace.SMEM),
            pl.BlockSpec((1, C, hw_tile), lambda n, h: (n, 0, h)),
        ],
        out_specs=pl.BlockSpec((1, 1, C), lambda n, h: (n, 0, 0)),
        compiler_params=pltpu.CompilerParams(
            dimension_semantics=("parallel", "arbitrary"),
            vmem_limit_bytes=budget),
    )(w_scaled, x3)

    # (N,1,C) -> (N,C,1): pure reshape of a tiny tensor (middle dim is 1).
    gate_c = gate.reshape(N, C, 1)

    # Pass 2: x * gate, embarrassingly parallel (N x HW-tiles) grid.
    out = pl.pallas_call(
        _eca_scale_kernel,
        out_shape=jax.ShapeDtypeStruct((N, C, hw), x.dtype),
        grid=(N, n_hw),
        in_specs=[
            pl.BlockSpec((1, C, 1), lambda n, h: (n, 0, 0)),
            pl.BlockSpec((1, C, hw_tile), lambda n, h: (n, 0, h)),
        ],
        out_specs=pl.BlockSpec((1, C, hw_tile), lambda n, h: (n, 0, h)),
        input_output_aliases=alias,
        compiler_params=pltpu.CompilerParams(
            dimension_semantics=("parallel", "parallel"),
            vmem_limit_bytes=budget),
    )(gate_c, x3)
    return out.reshape(N, C, H, W)


def eca_reference(x, conv_w):
    """Pure-JAX reference matching the PyTorch forward."""
    k = conv_w.shape[0]
    pad = (k - 1) // 2
    p = jnp.mean(x.astype(jnp.float32), axis=(2, 3))   # (N, C)
    p_pad = jnp.pad(p, ((0, 0), (pad, pad)))
    y = sum(conv_w[j] * p_pad[:, j:j + x.shape[1]] for j in range(k))
    y = jax.nn.sigmoid(y)
    return (x.astype(jnp.float32) * y[:, :, None, None]).astype(x.dtype)


if __name__ == "__main__":
    # Module config: in_channels=16 -> kernel_size = int(|(log2(16)+1)/2|)=2 -> 3 (odd)
    in_channels = 16
    gamma, b = 2, 1
    kernel_size = int(abs((math.log2(in_channels) + b) / gamma))
    kernel_size = kernel_size if kernel_size % 2 else kernel_size + 1

    key = jax.random.PRNGKey(0)
    kx, kw, kx2 = jax.random.split(key, 3)
    bound = 1.0 / math.sqrt(kernel_size)
    conv_w = jax.random.uniform(kw, (kernel_size,), jnp.float32, -bound, bound)

    # Main config: HW = 16*16 = 256 (128-aligned lane axis) -> fused path with
    # a 2-step grid (tb=1), keeping the pipeline/dual-TC axis populated.
    x = jax.random.normal(kx, (2, in_channels, 16, 16), dtype=jnp.float32)
    out = jax.block_until_ready(eca_block(x, conv_w))
    ref = eca_reference(x, conv_w)
    assert out.shape == x.shape
    assert jnp.allclose(out, ref, atol=1e-5, rtol=1e-4), "fused path mismatch"

    # Also exercise the two-pass fallback (HW-reduction accumulation, ragged
    # last-tile masking, 2-D parallel rescale grid) on a small ragged shape.
    x2 = jax.random.normal(kx2, (2, in_channels, 12, 12), dtype=jnp.float32)
    out2 = jax.block_until_ready(
        eca_block(x2, conv_w, force_two_pass=True, hw_tile=128))
    ref2 = eca_reference(x2, conv_w)
    assert out2.shape == x2.shape
    assert jnp.allclose(out2, ref2, atol=1e-5, rtol=1e-4), "two-pass mismatch"

    print("KERNEL_OK")
</pallas_src>

<mosaic_0001>
module attributes {stable_mosaic.version = 11 : i64} {
  func.func @_eca_fused_kernel(%arg0: i32, %arg1: memref<3xf32, #tpu.memory_space<smem>>, %arg2: memref<1x16x256xf32, #tpu.memory_space<vmem>>, %arg3: memref<1x16x256xf32, #tpu.memory_space<vmem>>) attributes {dimension_semantics = [#tpu.dimension_semantics<parallel>], iteration_bounds = array<i64: 2>, scalar_prefetch = 0 : i64, scratch_operands = 0 : i64, tpu.core_type = #tpu.core_type<tc>, window_params = [{transform_indices = @transform_0, window_bounds = array<i64: 3>}, {transform_indices = @transform_1, window_bounds = array<i64: 1, 16, 256>}, {transform_indices = @transform_2, window_bounds = array<i64: 1, 16, 256>}]} {
    %c0 = arith.constant 0 : index
    %c0_0 = arith.constant 0 : index
    %c0_1 = arith.constant 0 : index
    %0 = vector.load %arg2[%c0, %c0_0, %c0_1] : memref<1x16x256xf32, #tpu.memory_space<vmem>>, vector<1x16x256xf32>
    %cst = arith.constant dense<0.000000e+00> : vector<1x16xf32>
    %1 = vector.multi_reduction <add>, %0, %cst [2] : vector<1x16x256xf32> to vector<1x16xf32>
    %c0_i32 = arith.constant 0 : i32
    %2 = arith.sitofp %c0_i32 : i32 to f32
    %3 = vector.broadcast %2 : f32 to vector<1x1xf32>
    %4 = tpu.concatenate %3, %1 in 1 : vector<1x1xf32>, vector<1x16xf32> -> vector<1x17xf32>
    %5 = vector.broadcast %2 : f32 to vector<1x1xf32>
    %6 = tpu.concatenate %4, %5 in 1 : vector<1x17xf32>, vector<1x1xf32> -> vector<1x18xf32>
    %cst_2 = arith.constant 0.000000e+00 : f32
    %7 = vector.broadcast %cst_2 : f32 to vector<1x16xf32>
    %c0_3 = arith.constant 0 : index
    %8 = memref.load %arg1[%c0_3] : memref<3xf32, #tpu.memory_space<smem>>
    %9 = vector.extract_strided_slice %6 {offsets = [0, 0], sizes = [1, 16], strides = [1, 1]} : vector<1x18xf32> to vector<1x16xf32>
    %10 = vector.broadcast %8 : f32 to vector<1x16xf32>
    %11 = arith.mulf %10, %9 : vector<1x16xf32>
    %12 = arith.addf %7, %11 : vector<1x16xf32>
    %c1 = arith.constant 1 : index
    %13 = memref.load %arg1[%c1] : memref<3xf32, #tpu.memory_space<smem>>
    %14 = vector.extract_strided_slice %6 {offsets = [0, 1], sizes = [1, 16], strides = [1, 1]} : vector<1x18xf32> to vector<1x16xf32>
    %15 = vector.broadcast %13 : f32 to vector<1x16xf32>
    %16 = arith.mulf %15, %14 : vector<1x16xf32>
    %17 = arith.addf %12, %16 : vector<1x16xf32>
    %c2 = arith.constant 2 : index
    %18 = memref.load %arg1[%c2] : memref<3xf32, #tpu.memory_space<smem>>
    %19 = vector.extract_strided_slice %6 {offsets = [0, 2], sizes = [1, 16], strides = [1, 1]} : vector<1x18xf32> to vector<1x16xf32>
    %20 = vector.broadcast %18 : f32 to vector<1x16xf32>
    %21 = arith.mulf %20, %19 : vector<1x16xf32>
    %22 = arith.addf %17, %21 : vector<1x16xf32>
    %23 = arith.negf %22 : vector<1x16xf32>
    %24 = math.exp %23 : vector<1x16xf32>
    %cst_4 = arith.constant 1.000000e+00 : f32
    %25 = vector.broadcast %cst_4 : f32 to vector<1x16xf32>
    %26 = arith.addf %25, %24 : vector<1x16xf32>
    %27 = arith.divf %25, %26 : vector<1x16xf32>
    %c0_5 = arith.constant 0 : index
    %c0_6 = arith.constant 0 : index
    %c0_7 = arith.constant 0 : index
    %28 = vector.load %arg2[%c0_5, %c0_6, %c0_7] : memref<1x16x256xf32, #tpu.memory_space<vmem>>, vector<1x16x256xf32>
    %29 = vector.shape_cast %27 : vector<1x16xf32> to vector<1x16x1xf32>
    %30 = vector.broadcast %29 : vector<1x16x1xf32> to vector<1x16x256xf32>
    %31 = arith.mulf %28, %30 : vector<1x16x256xf32>
    %c0_8 = arith.constant 0 : index
    %c0_9 = arith.constant 0 : index
    %c0_10 = arith.constant 0 : index
    %32 = vector.load %arg3[%c0_8, %c0_9, %c0_10] : memref<1x16x256xf32, #tpu.memory_space<vmem>>, vector<1x16x256xf32>
    tpu.vector_store %arg3[%c0_8, %c0_9, %c0_10], %31 {strides = array<i32>} : memref<1x16x256xf32, #tpu.memory_space<vmem>>, vector<1x16x256xf32>,
    return
  }
  func.func @transform_0(%arg0: i32) -> i32 {
    %c0_i32 = arith.constant 0 : i32
    %c0_i32_0 = arith.constant 0 : i32
    return %c0_i32 : i32
  }
  func.func @transform_1(%arg0: i32) -> (i32, i32, i32) {
    %c0_i32 = arith.constant 0 : i32
    %c0_i32_0 = arith.constant 0 : i32
    %c0_i32_1 = arith.constant 0 : i32
    return %arg0, %c0_i32, %c0_i32_0 : i32, i32, i32
  }
  func.func @transform_2(%arg0: i32) -> (i32, i32, i32) {
    %c0_i32 = arith.constant 0 : i32
    %c0_i32_0 = arith.constant 0 : i32
    %c0_i32_1 = arith.constant 0 : i32
    return %arg0, %c0_i32, %c0_i32_0 : i32, i32, i32
  }
}

</mosaic_0001>

<llo_original>
// kernel: tpu_custom_call.1
$region0: #{tpu_custom_call.1}
  #allocation0 [shape = 'u32[]', space=smem, size = 0x4, offset = 0x4, fixed_abs, tag = 'smem constant byte address 0x4 - core index']
  #allocation1 [shape = 'u32[72,128]{1,0:T(1,128)}', space=vmem, size = 0x9000, scoped, tag = 'internal scratch']
  %s0 = inlined_call_operand.hbm [shape: f32[3], index: 0, kind: input, shape index: {}]
  %s1 = inlined_call_operand.hbm [shape: f32[2,16,256], index: 1, kind: input, shape index: {}]
  %s2 = inlined_call_operand.hbm [shape: f32[2,16,256], index: 2, kind: output, shape index: {}]
  %s3 = sld [smem:[#allocation0]]
  $region49: #{tpu_custom_call.1} parent=0
    _
  %s5 = ssub.s32 1, %s3
  %s6 = scalar_select 0, %s5, %s3
  $region1: #{tpu_custom_call.1} parent=0
    #allocation2 [shape = 'u8[512]{0}', space=smem, size = 0x200, scoped, tag = 'input window, operand 0, single buffered']
    #allocation3 [shape = 's32[2]{0}', space=sflag, size = 0x8, scoped, tag = 'scoped memory for tpu_custom_call.1']
    #allocation4 [shape = 's32[2]{0}', space=sflag, size = 0x8, scoped, tag = 'scoped memory for tpu_custom_call.1']
    #allocation5 [shape = 's32[2]{0}', space=sflag, size = 0x8, scoped, tag = 'scoped memory for tpu_custom_call.1']
    #allocation6 [shape = 'u8[32768]{0}', space=vmem, size = 0x8000, scoped, tag = 'input window, operand 1']
    #allocation7 [shape = 'u8[32768]{0}', space=vmem, size = 0x8000, scoped, tag = 'output window, operand 0']
    %7 = vsyncpa [#allocation5], 0
    %8 = vsyncpa [#allocation3], 0
    %s9 = scalar_lea.sflag [#allocation3], 1
    %10 = vsyncpa %s9, 0
    %11 = vsyncpa [#allocation4], 0
    %s12 = scalar_lea.sflag [#allocation4], 1
    %13 = vsyncpa %s12, 0
    loop: start=0, step=1, limit=4
    $region2: #{tpu_custom_call.1} parent=1 // loop_pre_header
      _
    $region3: #{tpu_custom_call.1} parent=1 // loop_header
      %s15 = sphi 0, %s19
      %p16 = scmp.ge.s32.totalorder %s15, 4
      %s23 = sphi 0, %s23
      %s25 = sphi 0, %s23
      %s26 = sphi 0, %s25
      %s40 = sphi 0, %s26
      %s46 = sphi 0, %s48
      %s49 = sphi 0, %s46
      %s50 = sphi 0, %s49
      %s66 = sphi 0, %s50
      %s72 = sphi 0, %s74
      %s75 = sphi 0, %s72
      %s76 = sphi 0, %s75
      %s92 = sphi 0, %s76
    $region4: #{tpu_custom_call.1} parent=1 // loop_header_branch
      %18 = sbr.rel (%p16) target = $region8
    $region5: #{tpu_custom_call.1} parent=1 // loop_body
      %s20 = ssub.s32 %s15, 1
      %s21 = ssub.s32 %s15, 2
      %s22 = sadd.s32 %s15, 1
      %s24 = sadd.s32 %s23, 1
      %p27 = scmp.eq.s32.totalorder %s15, 1
      %p28 = scmp.ne.s32.totalorder %s23, %s25
      %p29 = scmp.eq.s32.totalorder %s15, 0
      %p30 = por %p28, %p29
      %p31 = scmp.ne.s32.totalorder %s23, %s25
      %p32 = scmp.eq.s32.totalorder %s20, 1
      %p33 = por %p31, %p32
      %p34 = scmp.ne.s32.totalorder %s25, %s26
      %p35 = scmp.eq.s32.totalorder %s20, 0
      %p36 = por %p34, %p35
      %p37 = scmp.ne.s32.totalorder %s25, %s26
      %p38 = scmp.eq.s32.totalorder %s21, 1
      %p39 = por %p37, %p38
      %p41 = scmp.ne.s32.totalorder %s26, %s40
      %p42 = scmp.eq.s32.totalorder %s21, 0
      %p43 = por %p41, %p42
      %s44 = ssub.s32 %s15, %s22
      %p45 = scmp.eq.s32.totalorder %s44, 0
      %s47 = sadd.s32 %s46, 1
      %s48 = scalar_select %p45, %s46, %s47
      %p51 = pneg %p45
      %p52 = scmp.eq.s32.totalorder %s15, 1
      %p53 = por %p51, %p52
      %p54 = scmp.ne.s32.totalorder %s46, %s49
      %p55 = scmp.eq.s32.totalorder %s15, 0
      %p56 = por %p54, %p55
      %p57 = scmp.ne.s32.totalorder %s46, %s49
      %p58 = scmp.eq.s32.totalorder %s20, 1
      %p59 = por %p57, %p58
      %p60 = scmp.ne.s32.totalorder %s49, %s50
      %p61 = scmp.eq.s32.totalorder %s20, 0
      %p62 = por %p60, %p61
      %p63 = scmp.ne.s32.totalorder %s49, %s50
      %p64 = scmp.eq.s32.totalorder %s21, 1
      %p65 = por %p63, %p64
      %p67 = scmp.ne.s32.totalorder %s50, %s66
      %p68 = scmp.eq.s32.totalorder %s21, 0
      %p69 = por %p67, %p68
      %s70 = ssub.s32 %s15, %s22
      %p71 = scmp.eq.s32.totalorder %s70, 0
      %s73 = sadd.s32 %s72, 1
      %s74 = scalar_select %p71, %s72, %s73
      %p77 = pneg %p71
      %p78 = scmp.eq.s32.totalorder %s15, 1
      %p79 = por %p77, %p78
      %p80 = scmp.ne.s32.totalorder %s72, %s75
      %p81 = scmp.eq.s32.totalorder %s15, 0
      %p82 = por %p80, %p81
      %p83 = scmp.ne.s32.totalorder %s72, %s75
      %p84 = scmp.eq.s32.totalorder %s20, 1
      %p85 = por %p83, %p84
      %p86 = scmp.ne.s32.totalorder %s75, %s76
      %p87 = scmp.eq.s32.totalorder %s20, 0
      %p88 = por %p86, %p87
      %p89 = scmp.ne.s32.totalorder %s75, %s76
      %p90 = scmp.eq.s32.totalorder %s21, 1
      %p91 = por %p89, %p90
      %p93 = scmp.ne.s32.totalorder %s76, %s92
      %p94 = scmp.eq.s32.totalorder %s21, 0
      %p95 = por %p93, %p94
      %p96 = scmp.le.s32.totalorder 1, %s15
      %p97 = scmp.lt.s32.totalorder %s15, 3
      %p98 = pnand %p96, %p97
      %p99 = pneg %p98
      // Predicated region
      $region9: #{tpu_custom_call.1} parent=5 // pred_check
        _
      $region10: #{tpu_custom_call.1} parent=5 // pred_check_branch
        %101 = sbr.rel (%p98) target = $region12
      $region11: #{tpu_custom_call.1} parent=5 // pred_region
        %s102 = ssub.s32 %s15, 1
        // Predicated region
        $region13: #{tpu_custom_call.1} parent=11 // pred_check
          %p103 = pneg %p36
        $region14: #{tpu_custom_call.1} parent=11 // pred_check_branch
          %105 = sbr.rel (%p103) target = $region16
        $region15: #{tpu_custom_call.1} parent=11 // pred_region
          %107 = vsyncadd [#allocation5], 0
          %s109 = sshll.u32 %s0, 4
          %s110 = int_to_ptr.hbm [resolvable:$true] %s109
          %112 = dma.hbm_to_smem %s110, 16, [#allocation2], [#allocation5]
        $region16: #{tpu_custom_call.1} parent=11 // pred_fallthru
          _
      $region12: #{tpu_custom_call.1} parent=5 // pred_fallthru
        _
      %p113 = scmp.lt.s32.totalorder %s15, 2
      // Predicated region
      $region17: #{tpu_custom_call.1} parent=5 // pred_check
        %p114 = pneg %p113
      $region18: #{tpu_custom_call.1} parent=5 // pred_check_branch
        %116 = sbr.rel (%p114) target = $region20
      $region19: #{tpu_custom_call.1} parent=5 // pred_region
        // Predicated region
        $region21: #{tpu_custom_call.1} parent=19 // pred_check
          %p117 = pneg %p56
        $region22: #{tpu_custom_call.1} parent=19 // pred_check_branch
          %119 = sbr.rel (%p117) target = $region24
        $region23: #{tpu_custom_call.1} parent=19 // pred_region
          %s120 = sand.u32 %s46, 1
          %s121 = scalar_lea.sflag [#allocation3], %s120
          %s122 = sand.u32 %s46, 1
          %s123 = smul.addr %s122, 32
          %s124 = scalar_lea.vmem [#allocation6], %s123
          %126 = vsyncadd %s121, 0
          %s127 = smul.addr %s15, 4
          %s128 = smul.addr %s127, 8
          %s129 = scalar_lea.hbm %s1, %s128
          %s130 = sshll.u32 %s129, 4
          %s131 = int_to_ptr.hbm [resolvable:$true] %s130
          %s132 = sshll.u32 %s124, 4
          %s133 = int_to_ptr.vmem [resolvable:$true] %s132
          %138 = dma.hbm_to_vmem [thread:$0]  %s131, 512, %s133, %s121, 256, 256, 16
        $region24: #{tpu_custom_call.1} parent=19 // pred_fallthru
          _
      $region20: #{tpu_custom_call.1} parent=5 // pred_fallthru
        _
      %p139 = scmp.le.s32.totalorder 1, %s15
      %p140 = scmp.lt.s32.totalorder %s15, 3
      %p141 = pnand %p139, %p140
      %p142 = pneg %p141
      // Predicated region
      $region25: #{tpu_custom_call.1} parent=5 // pred_check
        _
      $region26: #{tpu_custom_call.1} parent=5 // pred_check_branch
        %144 = sbr.rel (%p141) target = $region28
      $region27: #{tpu_custom_call.1} parent=5 // pred_region
        %s145 = ssub.s32 %s15, 1
        // Predicated region
        $region29: #{tpu_custom_call.1} parent=27 // pred_check
          %p146 = pneg %p36
        $region30: #{tpu_custom_call.1} parent=27 // pred_check_branch
          %148 = sbr.rel (%p146) target = $region32
        $region31: #{tpu_custom_call.1} parent=27 // pred_region
          %150 = dma.done [#allocation5], 16
        $region32: #{tpu_custom_call.1} parent=27 // pred_fallthru
          _
        %s151 = sand.u32 %s49, 1
        %s152 = scalar_lea.sflag [#allocation3], %s151
        %s153 = sand.u32 %s49, 1
        %s154 = smul.addr %s153, 32
        %s155 = scalar_lea.vmem [#allocation6], %s154
        // Predicated region
        $region33: #{tpu_custom_call.1} parent=27 // pred_check
          %p156 = pneg %p62
        $region34: #{tpu_custom_call.1} parent=27 // pred_check_branch
          %158 = sbr.rel (%p156) target = $region36
        $region35: #{tpu_custom_call.1} parent=27 // pred_region
          %160 = dma.done %s152, 512
        $region36: #{tpu_custom_call.1} parent=27 // pred_fallthru
          _
        %161 = sfence
        %p162 = pneg %p36
        %p163 = pneg %p33
        %s164 = sand.u32 %s49, 1
        %s165 = scalar_lea.sflag [#allocation3], %s164
        %s166 = sand.u32 %s49, 1
        %s167 = smul.addr %s166, 32
        %s168 = scalar_lea.vmem [#allocation6], %s167
        %p169 = pneg %p62
        %p170 = pneg %p59
        %p171 = pneg %p88
        %p172 = pneg %p85
        %s173 = sand.u32 %s75, 1
        %s174 = scalar_lea.sflag [#allocation4], %s173
        %s175 = sand.u32 %s75, 1
        %s176 = smul.addr %s175, 32
        %s177 = scalar_lea.vmem [#allocation7], %s176
        %v178 = vld [vmem:[%s155] sm:$0xff]
        %v179 = vld [vmem:[%s155 + $0x8] sm:$0xff]
        %v180 = vld [vmem:[%s155 + $0x10] sm:$0xff]
        %v181 = vld [vmem:[%s155 + $0x18] sm:$0xff]
        %v182 = vadd.f32 %v178, %v179
        %183 = vadd.xlane.f32.xlu0 %v182
        %v184 = vpop.xlane.xlu0 %183
        %v185 = vadd.f32 %v180, %v181
        %186 = vadd.xlane.f32.xlu0 %v185
        %v187 = vpop.xlane.xlu0 %186
        %v190 = vlaneseq
        %v191 = vand.u32 %v190, 127
        %v192 = vadd.s32 %v191, 4294967295
        %v193 = vperm.slane %v184, %v192
        %v194 = vadd.s32 %v191, 4294967287
        %v195 = vperm.slane %v187, %v194
        %vm196 = vcmask 138312
        %v197 = vsel %vm196, %v195, %v193
        %vm199 = vcmask 7168
        %v200 = vsel %vm199, 0.0, %v197
        %vm201 = vcmask 138240
        %v202 = vsel %vm201, %v200, 0.0
        %s203 = sld [smem:[#allocation2]]
        %v204 = vstv %s203
        %v205 = vmul.f32 %v204, %v202
        %v206 = vadd.f32 %v205, 0.0
        %s207 = sld [smem:[#allocation2 + $0x1]]
        %v208 = vstv %s207
        %v209 = vmul.f32 %v208, %v202
        %211 = vrot.lane.b32.xlu0 %v209, 127
        %v212 = vpop.permute.xlu0 %211
        %v214 = vadd.f32 %v206, %v212
        %s215 = sld [smem:[#allocation2 + $0x2]]
        %v216 = vstv %s215
        %v217 = vmul.f32 %v216, %v202
        %219 = vrot.lane.b32.xlu0 %v217, 126
        %v220 = vpop.permute.xlu0 %219
        %v222 = vadd.f32 %v214, %v220
        %v223 = vxor.u32 %v222, 2147483648
        %v224 = vmul.f32 %v223, 1.442695
        %v225 = vpow.pop %v224
        %v226 = vadd.f32 %v225, 1.0
        %v227 = vrcp.pop %v226
        %v228 = vmul.f32 %v226, %v227
        %v229 = vsub.f32 1.0, %v228
        %v230 = vmul.f32 %v227, %v229
        %v231 = vadd.f32 %v227, %v230
        %vm232 = vweird.f32 %v226
        %vm233 = vweird.f32 %v227
        %vm234 = vmor %vm232, %vm233
        %v235 = vsel %vm234, %v227, %v231
        %v236 = vand.u32 2147483647, %v226
        %vm237 = vcmp.eq.f32.partialorder %v236, 8.507059e+37
        %v238 = vand.u32 %v226, 2147483648
        %v239 = vor.u32 1.1754944e-38, %v238
        %v240 = vsel %vm237, %v239, %v235
        %v241 = vmul.f32 1.0, %v240
        %v242 = vperm.slane %v241, 0
        %v243 = vlaneseq
        %v244 = vshrl.u32 %v243, 7
        %246 = vset.pattern.permute.xlu0 %v244
        %247 = vperm.xlu0 %246, %v242
        %v248 = vpop.permute.xlu0 %247
        %v249 = vlaneseq
        %v250 = vshrl.u32 %v249, 7
        %v251 = vadd.s32 %v250, 8
        %252 = vset.pattern.permute.xlu0 %v251
        %253 = vperm.xlu0 %252, %v242
        %v254 = vpop.permute.xlu0 %253
        %v255 = vmul.f32 %v178, %v248
        %v256 = vmul.f32 %v179, %v248
        %v257 = vmul.f32 %v180, %v254
        %v258 = vmul.f32 %v181, %v254
        %259 = vst [vmem:[%s177] sm:$0xff] %v255
        %260 = vst [vmem:[%s177 + $0x8] sm:$0xff] %v256
        %261 = vst [vmem:[%s177 + $0x10] sm:$0xff] %v257
        %262 = vst [vmem:[%s177 + $0x18] sm:$0xff] %v258
        %s263 = sand.u32 %s75, 1
        %s264 = scalar_lea.sflag [#allocation4], %s263
        %s265 = sand.u32 %s75, 1
        %s266 = smul.addr %s265, 32
        %s267 = scalar_lea.vmem [#allocation7], %s266
        // Predicated region
        $region37: #{tpu_custom_call.1} parent=27 // pred_check
          %p268 = pneg %p85
        $region38: #{tpu_custom_call.1} parent=27 // pred_check_branch
          %270 = sbr.rel (%p268) target = $region40
        $region39: #{tpu_custom_call.1} parent=27 // pred_region
          %272 = vsyncadd %s264, 0
          %s273 = smul.addr %s20, 4
          %s274 = smul.addr %s273, 8
          %s275 = scalar_lea.hbm %s2, %s274
          %s276 = sshll.u32 %s267, 4
          %s277 = int_to_ptr.vmem [resolvable:$true] %s276
          %s278 = sshll.u32 %s275, 4
          %s279 = int_to_ptr.hbm [resolvable:$true] %s278
          %284 = dma.vmem_to_hbm [thread:$0]  %s277, 512, %s279, %s264, 256, 256, 16
        $region40: #{tpu_custom_call.1} parent=27 // pred_fallthru
          _
      $region28: #{tpu_custom_call.1} parent=5 // pred_fallthru
        _
      %p285 = scmp.le.s32.totalorder 2, %s15
      // Predicated region
      $region41: #{tpu_custom_call.1} parent=5 // pred_check
        %p286 = pneg %p285
      $region42: #{tpu_custom_call.1} parent=5 // pred_check_branch
        %288 = sbr.rel (%p286) target = $region44
      $region43: #{tpu_custom_call.1} parent=5 // pred_region
        %s289 = ssub.s32 %s15, 2
        // Predicated region
        $region45: #{tpu_custom_call.1} parent=43 // pred_check
          %p290 = pneg %p91
        $region46: #{tpu_custom_call.1} parent=43 // pred_check_branch
          %292 = sbr.rel (%p290) target = $region48
        $region47: #{tpu_custom_call.1} parent=43 // pred_region
          %s293 = sand.u32 %s76, 1
          %s294 = scalar_lea.sflag [#allocation4], %s293
          %s295 = sand.u32 %s76, 1
          %s296 = smul.addr %s295, 32
          %s297 = scalar_lea.vmem [#allocation7], %s296
          %299 = dma.done %s294, 512
        $region48: #{tpu_custom_call.1} parent=43 // pred_fallthru
          _
      $region44: #{tpu_custom_call.1} parent=5 // pred_fallthru
        _
    $region6: #{tpu_custom_call.1} parent=1 // loop_footer
      %s19 = sadd.s32 1, %s15
    $region7: #{tpu_custom_call.1} parent=1 // loop_footer_branch
      %14 = sbr.rel target = $region3
    $region8: #{tpu_custom_call.1} parent=1 // loop_exit
      _
    %300 = vsyncpa [#allocation3], 1
    %s301 = scalar_lea.sflag [#allocation3], 1
    %302 = vsyncpa %s301, 1
    %303 = vsyncpa [#allocation4], 1
    %s304 = scalar_lea.sflag [#allocation4], 1
    %305 = vsyncpa %s304, 1
    %306 = vsyncpa [#allocation5], 1
    %s307 = scalar_lea.sflag [#allocation5], 1
    %308 = vsyncpa %s307, 1

</llo_original>
